<compile_context>
chip_gen: v7x
topology: tpu7x:2x2x1
jax: 0.10.0
libtpu: 0.0.40
codegen_flags: <defaults>
</compile_context>

<pallas_src>
import functools

import jax
import jax.numpy as jnp
from jax.experimental import pallas as pl
from jax.experimental.pallas import tpu as pltpu

# Explicit scoped-VMEM limit: above v5e/v6e defaults (16/32 MiB), below v7x's
# 64 MiB physical per-TC VMEM.
_VMEM_LIMIT_BYTES = 32 * 1024 * 1024
# Per-block working-set budget used by the block picker (kept well below the
# limit above to leave headroom for compiler scratch).
_WORKING_SET_BUDGET = 16 * 1024 * 1024


def _ce_label_smooth_kernel(x_ref, tgt_ref, out_ref, *, epsilon: float,
                            num_classes: int, total_batch: int,
                            mask_rows: bool, low_precision: bool):
    # x_ref:   (TB, C)    logits in their native dtype (VMEM)
    # tgt_ref: (TB, 1)    int32 class indices (VMEM)
    # out_ref: (1, 1, 1)  f32 partial sum of per-row losses for this block
    x = x_ref[...]
    tb, c = x.shape
    if low_precision and x.dtype == jnp.bfloat16:
        xc = x                                    # bf16 VPU/EUP path (v6e/v7x)
    else:
        xc = x.astype(jnp.float32)                # cast AFTER the DMA

    # Numerically stable log-sum-exp along the class axis; accumulate in f32.
    m = jnp.max(xc, axis=-1, keepdims=True)                          # (TB, 1)
    z = xc - m                                                       # (TB, C)
    sum_exp = jnp.sum(jnp.exp(z).astype(jnp.float32), axis=-1,
                      keepdims=True)                                 # (TB, 1) f32
    lse = jnp.log(sum_exp)                                           # (TB, 1) f32

    # Fused smoothed-target reduction (sum_j w_j == 1):
    #   per_row = -sum_j w_j * (z_j - lse) = lse - sum_j w_j * z_j
    base_w = epsilon / num_classes
    tgt_w = (1.0 - epsilon) + base_w
    class_ids = jax.lax.broadcasted_iota(jnp.int32, (tb, c), 1)
    w = jnp.where(class_ids == tgt_ref[...],
                  jnp.float32(tgt_w), jnp.float32(base_w))           # (TB, C) f32
    wz = jnp.sum(w * z.astype(jnp.float32), axis=-1, keepdims=True)  # (TB, 1) f32
    per_row = lse - wz                                               # (TB, 1) f32

    if mask_rows:
        i = pl.program_id(0)
        last = pl.num_programs(0) - 1

        @pl.when(i == last)
        def _():
            # Padded rows only exist in the last block.  Use a SELECT so
            # inf/NaN from exp() of uninitialized padding cannot leak in.
            row_ids = jax.lax.broadcasted_iota(jnp.int32, (tb, 1), 0) + i * tb
            masked = jnp.where(row_ids < total_batch, per_row, 0.0)
            out_ref[...] = jnp.sum(masked).reshape(1, 1, 1)

        @pl.when(i != last)
        def _():
            out_ref[...] = jnp.sum(per_row).reshape(1, 1, 1)
    else:
        out_ref[...] = jnp.sum(per_row).reshape(1, 1, 1)


def _sublane_multiple(itemsize: int) -> int:
    # Sub-32-bit dtypes pack along sublanes: 8 (f32/i32), 16 (bf16), 32 (i8/fp8).
    return {4: 8, 2: 16, 1: 32}.get(itemsize, 8)


def _pick_block_rows(b: int, c: int, itemsize: int, sublane: int) -> int:
    # Per-row working-set bytes:
    #   2x double-buffered native-dtype logits row
    # + ~4 f32 (C,)-wide vector temps (compute copy / exp / weights / products)
    # + the (1,) int32 targets entry lane-padded to 128 lanes, x2 buffers.
    per_row = 2 * c * itemsize + 4 * c * 4 + 2 * 128 * 4
    rows = max(sublane, _WORKING_SET_BUDGET // per_row)
    if b > sublane:
        # Prefer >= 2 balanced blocks so v7x's two TensorCores both get work.
        half = -(-b // 2)                         # ceil(b / 2)
        half = -(-half // sublane) * sublane      # round UP to sublane multiple
        rows = min(rows, half)
    tb = min(b, rows)
    if tb < b:
        tb = max(sublane, (tb // sublane) * sublane)
    return min(tb, b)


def _bf16_compute_ok() -> bool:
    # bf16 VPU/EUP exist on v6e (Trillium) and v7x; v5e/v5p and older do not.
    try:
        kind = jax.devices()[0].device_kind.lower()
    except Exception:
        return False
    return not any(v in kind for v in ("v2", "v3", "v4", "v5"))


def cross_entropy_label_smooth(inputs, targets, *, num_classes: int,
                               epsilon: float, block_rows=None,
                               low_precision=None):
    """Pallas TPU implementation of CrossEntropyLabelSmooth.forward."""
    assert inputs.ndim == 2 and inputs.shape[1] == num_classes
    b, c = inputs.shape
    itemsize = jnp.dtype(inputs.dtype).itemsize
    sublane = _sublane_multiple(itemsize)
    if low_precision is None:
        low_precision = (inputs.dtype == jnp.bfloat16) and _bf16_compute_ok()

    if block_rows is not None:
        tb = min(int(block_rows), b)
    else:
        tb = _pick_block_rows(b, c, itemsize, sublane)
    num_blocks = pl.cdiv(b, tb)

    targets_2d = targets.astype(jnp.int32).reshape(b, 1)

    kernel = functools.partial(
        _ce_label_smooth_kernel,
        epsilon=float(epsilon),
        num_classes=int(num_classes),
        total_batch=int(b),
        mask_rows=(b % tb != 0),
        low_precision=bool(low_precision),
    )

    cost = pl.CostEstimate(
        flops=int(6 * b * c),                     # max/sub/cmp/select/mul/add passes
        transcendentals=int(b * c + b),           # exp over logits + log per row
        bytes_accessed=int(b * c * itemsize + b * 4 + num_blocks * 4),
    )

    partials = pl.pallas_call(
        kernel,
        out_shape=jax.ShapeDtypeStruct((num_blocks, 1, 1), jnp.float32),
        grid=(num_blocks,),
        in_specs=[
            pl.BlockSpec((tb, c), lambda i: (i, 0)),   # logits tile, native dtype
            pl.BlockSpec((tb, 1), lambda i: (i, 0)),   # targets tile
        ],
        out_specs=pl.BlockSpec((1, 1, 1), lambda i: (i, 0, 0)),  # per-block sum
        compiler_params=pltpu.CompilerParams(
            dimension_semantics=("parallel",),
            vmem_limit_bytes=_VMEM_LIMIT_BYTES),
        cost_estimate=cost,
    )(inputs, targets_2d)

    # Final reduction + mean over the GLOBAL batch in the JAX wrapper.
    return jnp.sum(partials) / b


def _reference(inputs, targets, num_classes, epsilon):
    log_probs = jax.nn.log_softmax(inputs.astype(jnp.float32), axis=1)
    one_hot = jax.nn.one_hot(targets, num_classes, dtype=jnp.float32)
    smooth = (1.0 - epsilon) * one_hot + epsilon / num_classes
    return (-smooth * log_probs).mean(0).sum()


if __name__ == "__main__":
    # Small shapes consistent with the module: batch=8, num_classes=32.
    batch = 8
    num_classes = 32
    epsilon = 0.1

    key = jax.random.PRNGKey(0)
    k_x, k_t = jax.random.split(key)
    logits = jax.random.normal(k_x, (batch, num_classes), dtype=jnp.float32)
    targets = jax.random.randint(k_t, (batch,), 0, num_classes, dtype=jnp.int32)

    loss = cross_entropy_label_smooth(
        logits, targets, num_classes=num_classes, epsilon=epsilon)
    loss = jax.block_until_ready(loss)
    ref = _reference(logits, targets, num_classes, epsilon)
    assert jnp.allclose(loss, ref, atol=1e-5, rtol=1e-5), (loss, ref)

    # Multi-block path with a padded edge block and native-bf16 ingestion:
    # B=20 bf16 -> auto block picker chooses TB=16 (bf16 sublane multiple and
    # >= 2 blocks for megacore), grid=2 with 4 padded rows in the last block.
    batch2 = 20
    k_x2, k_t2 = jax.random.split(jax.random.PRNGKey(1))
    logits2 = jax.random.normal(k_x2, (batch2, num_classes), dtype=jnp.float32)
    targets2 = jax.random.randint(k_t2, (batch2,), 0, num_classes, dtype=jnp.int32)
    logits2_bf16 = logits2.astype(jnp.bfloat16)

    loss2 = cross_entropy_label_smooth(
        logits2_bf16, targets2, num_classes=num_classes, epsilon=epsilon)
    loss2 = jax.block_until_ready(loss2)
    ref2 = _reference(logits2_bf16.astype(jnp.float32), targets2,
                      num_classes, epsilon)
    assert jnp.allclose(loss2, ref2, atol=2e-2, rtol=2e-2), (loss2, ref2)

    print("KERNEL_OK")
</pallas_src>

<mosaic_0001>
module attributes {stable_mosaic.version = 11 : i64} {
  func.func @_ce_label_smooth_kernel(%arg0: i32, %arg1: memref<8x32xf32, #tpu.memory_space<vmem>>, %arg2: memref<8x1xi32, #tpu.memory_space<vmem>>, %arg3: memref<1x1x1xf32, #tpu.memory_space<vmem>>) attributes {dimension_semantics = [#tpu.dimension_semantics<parallel>], iteration_bounds = array<i64: 1>, scalar_prefetch = 0 : i64, scratch_operands = 0 : i64, tpu.core_type = #tpu.core_type<tc>, window_params = [{transform_indices = @transform_0, window_bounds = array<i64: 8, 32>}, {transform_indices = @transform_1, window_bounds = array<i64: 8, 1>}, {transform_indices = @transform_2, window_bounds = array<i64: 1, 1, 1>}]} {
    %c0 = arith.constant 0 : index
    %c0_0 = arith.constant 0 : index
    %0 = vector.load %arg1[%c0, %c0_0] : memref<8x32xf32, #tpu.memory_space<vmem>>, vector<8x32xf32>
    %cst = arith.constant dense<0xFF800000> : vector<8xf32>
    %1 = vector.multi_reduction <maximumf>, %0, %cst [1] : vector<8x32xf32> to vector<8xf32>
    %2 = vector.shape_cast %1 : vector<8xf32> to vector<8x1xf32>
    %3 = vector.broadcast %2 : vector<8x1xf32> to vector<8x32xf32>
    %4 = arith.subf %0, %3 : vector<8x32xf32>
    %5 = math.exp %4 : vector<8x32xf32>
    %cst_1 = arith.constant dense<0.000000e+00> : vector<8xf32>
    %6 = vector.multi_reduction <add>, %5, %cst_1 [1] : vector<8x32xf32> to vector<8xf32>
    %7 = vector.shape_cast %6 : vector<8xf32> to vector<8x1xf32>
    %8 = math.log %7 : vector<8x1xf32>
    %9 = tpu.iota {dimensions = array<i32: 1>} : vector<8x32xi32>
    %c0_2 = arith.constant 0 : index
    %c0_3 = arith.constant 0 : index
    %10 = vector.load %arg2[%c0_2, %c0_3] : memref<8x1xi32, #tpu.memory_space<vmem>>, vector<8x1xi32>
    %11 = vector.broadcast %10 : vector<8x1xi32> to vector<8x32xi32>
    %12 = arith.cmpi eq, %9, %11 : vector<8x32xi32>
    %cst_4 = arith.constant 0.903124988 : f32
    %cst_5 = arith.constant 3.125000e-03 : f32
    %13 = vector.broadcast %cst_4 : f32 to vector<8x32xf32>
    %14 = vector.broadcast %cst_5 : f32 to vector<8x32xf32>
    %15 = arith.select %12, %13, %14 : vector<8x32xi1>, vector<8x32xf32>
    %16 = arith.mulf %15, %4 : vector<8x32xf32>
    %cst_6 = arith.constant dense<0.000000e+00> : vector<8xf32>
    %17 = vector.multi_reduction <add>, %16, %cst_6 [1] : vector<8x32xf32> to vector<8xf32>
    %18 = vector.shape_cast %17 : vector<8xf32> to vector<8x1xf32>
    %19 = arith.subf %8, %18 : vector<8x1xf32>
    %20 = vector.shape_cast %19 : vector<8x1xf32> to vector<1x8x1xf32>
    %cst_7 = arith.constant dense<0.000000e+00> : vector<1xf32>
    %21 = vector.multi_reduction <add>, %20, %cst_7 [1, 2] : vector<1x8x1xf32> to vector<1xf32>
    %22 = vector.shape_cast %21 : vector<1xf32> to vector<1x1x1xf32>
    %23 = vector.extract %22[0, 0, 0] : f32 from vector<1x1x1xf32>
    %24 = vector.broadcast %23 : f32 to vector<1x1x1xf32>
    %c0_8 = arith.constant 0 : index
    %c0_9 = arith.constant 0 : index
    %c0_10 = arith.constant 0 : index
    %25 = vector.load %arg3[%c0_8, %c0_9, %c0_10] : memref<1x1x1xf32, #tpu.memory_space<vmem>>, vector<1x1x1xf32>
    tpu.vector_store %arg3[%c0_8, %c0_9, %c0_10], %24 {strides = array<i32>} : memref<1x1x1xf32, #tpu.memory_space<vmem>>, vector<1x1x1xf32>,
    return
  }
  func.func @transform_0(%arg0: i32) -> (i32, i32) {
    %c0_i32 = arith.constant 0 : i32
    %c0_i32_0 = arith.constant 0 : i32
    return %arg0, %c0_i32 : i32, i32
  }
  func.func @transform_1(%arg0: i32) -> (i32, i32) {
    %c0_i32 = arith.constant 0 : i32
    %c0_i32_0 = arith.constant 0 : i32
    return %arg0, %c0_i32 : i32, i32
  }
  func.func @transform_2(%arg0: i32) -> (i32, i32, i32) {
    %c0_i32 = arith.constant 0 : i32
    %c0_i32_0 = arith.constant 0 : i32
    %c0_i32_1 = arith.constant 0 : i32
    return %arg0, %c0_i32, %c0_i32_0 : i32, i32, i32
  }
}

</mosaic_0001>

<llo_original>
// kernel: tpu_custom_call.1
$region0: #{tpu_custom_call.1}
  #allocation0 [shape = 'u32[]', space=smem, size = 0x4, offset = 0x4, fixed_abs, tag = 'smem constant byte address 0x4 - core index']
  #allocation1 [shape = 'u32[144,128]{1,0:T(1,128)}', space=vmem, size = 0x12000, scoped, tag = 'internal scratch']
  %s0 = inlined_call_operand.vmem [shape: f32[8,32], index: 0, kind: input, shape index: {}]
  %s1 = inlined_call_operand.vmem [shape: s32[8,1], index: 1, kind: input, shape index: {}]
  %s2 = inlined_call_operand.hbm [shape: f32[1,1,1], index: 2, kind: output, shape index: {}]
  %s3 = sld [smem:[#allocation0]]
  $region18: #{tpu_custom_call.1} parent=0
    _
  %s5 = ssub.s32 1, %s3
  %s6 = scalar_select 0, %s5, %s3
  $region1: #{tpu_custom_call.1} parent=0
    #allocation2 [shape = 'u8[512]{0}', space=vmem, size = 0x400, scoped, tag = 'output window, operand 0, single buffered']
    #allocation3 [shape = 's32[1]{0}', space=sflag, size = 0x4, scoped, tag = 'scoped memory for tpu_custom_call.1']
    %7 = vsyncpa [#allocation3], 0
    // Predicated region
    $region2: #{tpu_custom_call.1} parent=1 // pred_check
      _
    $region3: #{tpu_custom_call.1} parent=1 // pred_check_branch
      %9 = sbr.rel (0) target = $region5
    $region4: #{tpu_custom_call.1} parent=1 // pred_region
      _
    $region5: #{tpu_custom_call.1} parent=1 // pred_fallthru
      _
    // Predicated region
    $region6: #{tpu_custom_call.1} parent=1 // pred_check
      _
    $region7: #{tpu_custom_call.1} parent=1 // pred_check_branch
      %11 = sbr.rel (0) target = $region9
    $region8: #{tpu_custom_call.1} parent=1 // pred_region
      _
    $region9: #{tpu_custom_call.1} parent=1 // pred_fallthru
      _
    %v12 = vld [vmem:[%s0] sm:$0xff]
    %vm13 = vcmask 261120
    %v14 = vsel %vm13, %v12, -inf
    %15 = vmax.xlane.f32.xlu0 %v14
    %v16 = vpop.xlane.xlu0 %15
    %v17 = vsub.f32 %v12, %v16
    %v18 = vmul.f32 %v17, 1.442695
    %v19 = vpow.pop %v18
    %v20 = vsel %vm13, %v19, 0.0
    %21 = vadd.xlane.f32.xlu0 %v20
    %v22 = vpop.xlane.xlu0 %21
    %v23 = vlog2.pop %v22
    %v24 = vmul.f32 %v23, 0.6931472
    %v25 = vlaneseq
    %v26 = vand.u32 %v25, 127
    %v27 = vld [vmem:[%s1] sm:$0xff]
    %28 = vset.pattern.permute.xlu0 0
    %29 = vperm.xlu0 %28, %v27
    %v30 = vpop.permute.xlu0 %29
    %vm31 = vcmp.eq.s32.totalorder %v26, %v30
    %v32 = vsel %vm31, 0.903125, 0.003125
    %v33 = vmul.f32 %v32, %v17
    %v34 = vsel %vm13, %v33, 0.0
    %35 = vadd.xlane.f32.xlu0 %v34
    %v36 = vpop.xlane.xlu0 %35
    %v37 = vsub.f32 %v24, %v36
    %vm38 = vcmask 7168
    %v39 = vsel %vm38, %v37, 0.0
    %40 = vadd.xlane.f32.xlu0 %v39
    %v41 = vpop.xlane.xlu0 %40
    %v42 = vrot.slane %v41, 4
    %v43 = vadd.f32 %v41, %v42
    %v44 = vrot.slane %v43, 2
    %v45 = vadd.f32 %v43, %v44
    %v46 = vrot.slane %v45, 1
    %v47 = vadd.f32 %v45, %v46
    %s48 = vtos %v47
    %v49 = vstv %s48
    %vm50 = vcmask 0
    %51 = vst.msk [vmem:[#allocation2] sm:$0x1] %vm50, %v49
    // Predicated region
    $region10: #{tpu_custom_call.1} parent=1 // pred_check
      _
    $region11: #{tpu_custom_call.1} parent=1 // pred_check_branch
      %53 = sbr.rel (0) target = $region13
    $region12: #{tpu_custom_call.1} parent=1 // pred_region
      %s55 = ssub.s32 16, 16
      %56 = vsyncadd [#allocation3], %s55
      %s58 = sshll.u32 [#allocation2], 4
      %s59 = int_to_ptr.vmem [resolvable:$true] %s58
      %61 = dma.vmem_to_hbm [thread:$0]  %s59, 16, %s2, [#allocation3]
    $region13: #{tpu_custom_call.1} parent=1 // pred_fallthru
      _
    // Predicated region
    $region14: #{tpu_custom_call.1} parent=1 // pred_check
      _
    $region15: #{tpu_custom_call.1} parent=1 // pred_check_branch
      %63 = sbr.rel (0) target = $region17
    $region16: #{tpu_custom_call.1} parent=1 // pred_region
      %64 = dma.done [#allocation3], 16
    $region17: #{tpu_custom_call.1} parent=1 // pred_fallthru
      _
    %65 = vsyncpa [#allocation3], 1

</llo_original>
